<compile_context>
chip_gen: v5e
topology: v5e:2x2
jax: 0.10.0
libtpu: 0.0.40
codegen_flags: <defaults>
</compile_context>

<pallas_src>
import functools

import jax
import jax.numpy as jnp
from jax.experimental import pallas as pl
from jax.experimental.pallas import tpu as pltpu

_SQRT_HALF = 0.7071067811865476


def _gelu_exact_f32(h):
    # Exact (erf) GELU, matching torch.nn.GELU() default, computed in f32.
    return 0.5 * h * (1.0 + jax.lax.erf(h * jnp.float32(_SQRT_HALF)))


# ----------------------------- kernels --------------------------------------


def _mlp_kernel_acc_scratch(x_ref, w1_ref, b1_ref, w2_ref, b2_ref, o_ref, acc_ref):
    """Used when the output dtype is NOT f32: partial sums in an f32 scratch."""
    k = pl.program_id(1)

    @pl.when(k == 0)
    def _():
        acc_ref[...] = jnp.zeros_like(acc_ref)

    # c_fc partial: (tm, C) @ (C, th)  -- native dtypes on the MXU, f32 accum.
    h = jnp.dot(x_ref[...], w1_ref[...], preferred_element_type=jnp.float32)
    h = _gelu_exact_f32(h + b1_ref[...].astype(jnp.float32))

    # c_proj partial sum: (tm, th) @ (th, C), accumulated in f32 scratch.
    acc_ref[...] += jnp.dot(h.astype(w2_ref.dtype), w2_ref[...],
                            preferred_element_type=jnp.float32)

    @pl.when(k == pl.num_programs(1) - 1)
    def _():
        # Dropout: identity in eval / p=0.
        # TODO(synk): training-mode dropout (PRNG mask) not implemented.
        o_ref[...] = (acc_ref[...] + b2_ref[...].astype(jnp.float32)
                      ).astype(o_ref.dtype)


def _mlp_kernel_acc_in_out(x_ref, w1_ref, b1_ref, w2_ref, b2_ref, o_ref):
    """Used when the output dtype IS f32: accumulate directly into the resident
    output block (no (tm, C) f32 scratch -> less VMEM, important on v7x)."""
    k = pl.program_id(1)

    @pl.when(k == 0)
    def _():
        o_ref[...] = jnp.broadcast_to(b2_ref[...].astype(jnp.float32), o_ref.shape)

    h = jnp.dot(x_ref[...], w1_ref[...], preferred_element_type=jnp.float32)
    h = _gelu_exact_f32(h + b1_ref[...].astype(jnp.float32))
    o_ref[...] += jnp.dot(h.astype(w2_ref.dtype), w2_ref[...],
                          preferred_element_type=jnp.float32)


# --------------------------- tiling / config ---------------------------------


def _tpu_vmem_capacity_bytes():
    try:
        info = pltpu.get_tpu_info()
        cap = getattr(info, "vmem_capacity_bytes", None)
        if cap:
            return int(cap)
    except Exception:
        pass
    return 128 * 1024 * 1024  # conservative fallback


def _auto_tiles(C, x_bytes, w_bytes, out_bytes, use_scratch, vmem_budget):
    """Pick (tm, th): largest row tile first (arithmetic intensity per streamed
    weight byte ~ 2*tm flop/byte), shrink the hidden tile before the row tile
    (v7x guidance), keeping the double-buffered footprint inside the budget."""
    for tm in (512, 384, 256, 128, 64):
        for th in (512, 256, 128):
            fp = (2 * tm * C * x_bytes           # x block, double-buffered
                  + 2 * C * th * w_bytes         # W1 tile, double-buffered
                  + 2 * th * C * w_bytes         # W2 tile, double-buffered
                  + 2 * (th + C) * 4             # biases (upper bound)
                  + 2 * tm * C * out_bytes)      # output block, double-buffered
            if use_scratch:
                fp += tm * C * 4                 # f32 accumulator scratch
            if fp <= vmem_budget:
                return tm, th
    return 64, 128


def _choose_hidden_tile(H, preferred):
    """Return (th, H_padded). Prefer a 128-aligned divisor of H; otherwise pad
    H up to a multiple of th (zero-padded W1 columns / b1 / W2 rows contribute
    exactly 0), keeping the streamed-tile structure instead of going resident."""
    if H <= preferred:
        return H, H
    th = max(preferred - (preferred % 128), 128)
    cand = th
    while cand >= 128:
        if H % cand == 0:
            return cand, H
        cand -= 128
    Hp = ((H + th - 1) // th) * th
    return th, Hp


# ------------------------------ forward --------------------------------------


@functools.partial(
    jax.jit,
    static_argnames=("tm", "th", "hp", "matmul_dtype_name", "vmem_limit",
                     "out_dtype_name"))
def _mlp_forward(x2, w1, b1, w2, b2, *, tm, th, hp, matmul_dtype_name,
                 vmem_limit, out_dtype_name):
    M, C = x2.shape
    H = w1.shape[1]
    out_dtype = jnp.dtype(out_dtype_name)

    if matmul_dtype_name is not None:
        md = jnp.dtype(matmul_dtype_name)
        x2 = x2.astype(md)
        w1 = w1.astype(md)
        w2 = w2.astype(md)

    if hp > H:
        # Zero-pad the hidden dim: GELU(0 + 0) = 0, times zero W2 rows adds 0.
        w1 = jnp.pad(w1, ((0, 0), (0, hp - H)))
        b1 = jnp.pad(b1, ((0, 0), (0, hp - H)))
        w2 = jnp.pad(w2, ((0, hp - H), (0, 0)))

    grid_rows = pl.cdiv(M, tm)         # partial last row tile; no HBM padding copy
    grid_k = hp // th

    use_scratch = out_dtype != jnp.float32
    kernel = _mlp_kernel_acc_scratch if use_scratch else _mlp_kernel_acc_in_out
    scratch_shapes = [pltpu.VMEM((tm, C), jnp.float32)] if use_scratch else []

    w_bytes = w1.dtype.itemsize
    bytes_accessed = (
        M * C * x2.dtype.itemsize                 # x rows, read once
        + grid_rows * 2 * C * hp * w_bytes        # W1 + W2 re-streamed per row tile
        + hp * b1.dtype.itemsize + C * b2.dtype.itemsize
        + M * C * out_dtype.itemsize)             # output
    cost = pl.CostEstimate(
        flops=4 * M * C * hp,                     # two (M, C, H)-shaped matmuls
        transcendentals=M * hp,                   # erf on the hidden activations
        bytes_accessed=int(bytes_accessed))

    out2 = pl.pallas_call(
        kernel,
        out_shape=jax.ShapeDtypeStruct((M, C), out_dtype),
        grid_spec=pltpu.PrefetchScalarGridSpec(
            num_scalar_prefetch=0,
            grid=(grid_rows, grid_k),
            in_specs=[
                pl.BlockSpec((tm, C), lambda i, k: (i, 0)),   # x rows (resident over k)
                pl.BlockSpec((C, th), lambda i, k: (0, k)),   # W1 hidden tile (streamed)
                pl.BlockSpec((1, th), lambda i, k: (0, k)),   # b1 hidden tile
                pl.BlockSpec((th, C), lambda i, k: (k, 0)),   # W2 hidden tile (streamed)
                pl.BlockSpec((1, C),  lambda i, k: (0, 0)),   # b2
            ],
            out_specs=pl.BlockSpec((tm, C), lambda i, k: (i, 0)),
            scratch_shapes=scratch_shapes,
        ),
        compiler_params=pltpu.CompilerParams(
            # Row axis shards across TensorCores (v7x megacore); the hidden
            # (reduction) axis stays innermost / "arbitrary".
            dimension_semantics=("parallel", "arbitrary"),
            vmem_limit_bytes=int(vmem_limit),
        ),
        cost_estimate=cost,
    )(x2, w1, b1, w2, b2)
    return out2


def mlp_pallas(x, w1, b1, w2, b2, *, tm=None, th=None, matmul_dtype=None):
    """Fused MLP forward: y = c_proj(GELU(c_fc(x))); dropout = identity (eval).

    x: (B, T, C); w1: (C, 4C); b1: (1, 4C); w2: (4C, C); b2: (1, C).
    Pass `matmul_dtype=jnp.bfloat16` (recommended on TPU) to run the two
    matmuls natively on the MXU with halved weight DMA; accumulation and bias
    adds stay in f32 and the output keeps x.dtype.
    """
    B, T, C = x.shape
    H = w1.shape[1]
    M = B * T
    out_dtype = jnp.dtype(x.dtype)

    compute_dtype = (jnp.dtype(matmul_dtype) if matmul_dtype is not None
                     else jnp.dtype(x.dtype))
    x_bytes = compute_dtype.itemsize
    w_bytes = (compute_dtype.itemsize if matmul_dtype is not None
               else jnp.dtype(w1.dtype).itemsize)
    out_bytes = out_dtype.itemsize
    use_scratch = out_dtype != jnp.float32

    # Derive the VMEM limit from the actual chip (v5e/v6e: 128 MiB -> ~96 MiB,
    # v7x: 64 MiB -> ~48 MiB) instead of hard-coding, and leave headroom for
    # Mosaic's internal scratch when choosing tiles.
    vmem_cap = _tpu_vmem_capacity_bytes()
    vmem_limit = min((vmem_cap * 3) // 4, 100 * 1024 * 1024)
    vmem_budget = int(vmem_limit * 0.85)

    tm_auto, th_auto = _auto_tiles(C, x_bytes, w_bytes, out_bytes, use_scratch,
                                   vmem_budget)
    tm = tm_auto if tm is None else tm
    th = th_auto if th is None else th

    tm_eff = min(tm, M)                 # whole-row tile for small M (no padding)
    th_eff, hp = _choose_hidden_tile(H, th)

    # TODO(synk): for tiny-M (decode) shapes on v7x the row grid collapses to 1
    # and one TensorCore idles; a hidden-dim core split with per-core partial
    # sums would be needed to use both cores.

    matmul_dtype_name = (None if matmul_dtype is None
                         else jnp.dtype(matmul_dtype).name)

    out2 = _mlp_forward(
        x.reshape(M, C), w1, b1, w2, b2,
        tm=tm_eff, th=th_eff, hp=hp,
        matmul_dtype_name=matmul_dtype_name,
        vmem_limit=int(vmem_limit),
        out_dtype_name=out_dtype.name)
    return out2.reshape(B, T, C)


def mlp_reference(x, w1, b1, w2, b2):
    """Pure-JAX reference (f32 math, exact erf GELU) for validation."""
    h = x.astype(jnp.float32) @ w1.astype(jnp.float32) + b1.astype(jnp.float32)
    h = 0.5 * h * (1.0 + jax.lax.erf(h / jnp.sqrt(2.0)))
    y = h @ w2.astype(jnp.float32) + b2.astype(jnp.float32)
    return y


if __name__ == "__main__":
    # Small config: batch=2, seq=8, n_embd=32, bias=True, dropout=0.0
    B, T, C = 2, 8, 32
    H = 4 * C

    key = jax.random.PRNGKey(0)
    kx, k1, k2, kb1, kb2 = jax.random.split(key, 5)

    x = jax.random.normal(kx, (B, T, C), dtype=jnp.float32)
    # Parameters stored as (in, out) -- transposed from PyTorch's (out, in).
    w1 = jax.random.normal(k1, (C, H), dtype=jnp.float32) * (1.0 / jnp.sqrt(C))
    b1 = jax.random.normal(kb1, (1, H), dtype=jnp.float32) * 0.02
    w2 = jax.random.normal(k2, (H, C), dtype=jnp.float32) * (1.0 / jnp.sqrt(H))
    b2 = jax.random.normal(kb2, (1, C), dtype=jnp.float32) * 0.02

    y_ref = mlp_reference(x, w1, b1, w2, b2)

    # 1) f32 path (matches PyTorch f32 forward semantics; tight tolerance).
    y32 = jax.block_until_ready(mlp_pallas(x, w1, b1, w2, b2))
    assert y32.shape == (B, T, C)
    assert jnp.allclose(y32.astype(jnp.float32), y_ref, atol=1e-4, rtol=1e-4), \
        "f32 path mismatch vs reference"

    # 2) bf16 fast path (native MXU, halved weight DMA); bf16 quantization of
    #    x/W1/W2 and the hidden activation -> looser tolerance (expected).
    ybf = jax.block_until_ready(
        mlp_pallas(x, w1, b1, w2, b2, matmul_dtype=jnp.bfloat16))
    assert ybf.shape == (B, T, C)
    assert jnp.allclose(ybf.astype(jnp.float32), y_ref, atol=3e-2, rtol=3e-2), \
        "bf16 matmul path mismatch vs reference"

    # 3) bf16 inputs/outputs (exercises the f32-scratch accumulator kernel).
    ybf_io = jax.block_until_ready(
        mlp_pallas(x.astype(jnp.bfloat16), w1.astype(jnp.bfloat16), b1,
                   w2.astype(jnp.bfloat16), b2))
    assert ybf_io.dtype == jnp.bfloat16 and ybf_io.shape == (B, T, C)
    assert jnp.allclose(ybf_io.astype(jnp.float32), y_ref, atol=5e-2, rtol=5e-2), \
        "bf16 I/O path mismatch vs reference"

    print("KERNEL_OK")
</pallas_src>

<mosaic_0001>
module attributes {stable_mosaic.version = 11 : i64} {
  func.func @_mlp_kernel_acc_in_out(%arg0: i32, %arg1: i32, %arg2: memref<16x32xf32, #tpu.memory_space<vmem>>, %arg3: memref<32x128xf32, #tpu.memory_space<vmem>>, %arg4: memref<1x128xf32, #tpu.memory_space<vmem>>, %arg5: memref<128x32xf32, #tpu.memory_space<vmem>>, %arg6: memref<1x32xf32, #tpu.memory_space<vmem>>, %arg7: memref<16x32xf32, #tpu.memory_space<vmem>>) attributes {dimension_semantics = [#tpu.dimension_semantics<parallel>, #tpu.dimension_semantics<arbitrary>], iteration_bounds = array<i64: 1, 1>, scalar_prefetch = 0 : i64, scratch_operands = 0 : i64, tpu.core_type = #tpu.core_type<tc>, window_params = [{transform_indices = @transform_0, window_bounds = array<i64: 16, 32>}, {transform_indices = @transform_1, window_bounds = array<i64: 32, 128>}, {transform_indices = @transform_2, window_bounds = array<i64: 1, 128>}, {transform_indices = @transform_3, window_bounds = array<i64: 128, 32>}, {pipeline_mode = #tpu.pipeline_mode<synchronous>, transform_indices = @transform_4, window_bounds = array<i64: 1, 32>}, {transform_indices = @transform_5, window_bounds = array<i64: 16, 32>}]} {
    %c0_i32 = arith.constant 0 : i32
    %0 = arith.cmpi eq, %arg1, %c0_i32 : i32
    %1 = arith.extui %0 : i1 to i32
    %c0_i32_0 = arith.constant 0 : i32
    %2 = arith.cmpi ne, %1, %c0_i32_0 : i32
    scf.if %2 {
      %c0_16 = arith.constant 0 : index
      %c0_17 = arith.constant 0 : index
      %22 = vector.load %arg6[%c0_16, %c0_17] : memref<1x32xf32, #tpu.memory_space<vmem>>, vector<1x32xf32>
      %23 = vector.shape_cast %22 : vector<1x32xf32> to vector<1x32xf32>
      %24 = vector.broadcast %23 : vector<1x32xf32> to vector<16x32xf32>
      %c0_18 = arith.constant 0 : index
      %c0_19 = arith.constant 0 : index
      %25 = vector.load %arg7[%c0_18, %c0_19] : memref<16x32xf32, #tpu.memory_space<vmem>>, vector<16x32xf32>
      tpu.vector_store %arg7[%c0_18, %c0_19], %24 {strides = array<i32>} : memref<16x32xf32, #tpu.memory_space<vmem>>, vector<16x32xf32>,
    } else {
    }
    %c0 = arith.constant 0 : index
    %c0_1 = arith.constant 0 : index
    %3 = vector.load %arg2[%c0, %c0_1] : memref<16x32xf32, #tpu.memory_space<vmem>>, vector<16x32xf32>
    %c0_2 = arith.constant 0 : index
    %c0_3 = arith.constant 0 : index
    %4 = vector.load %arg3[%c0_2, %c0_3] : memref<32x128xf32, #tpu.memory_space<vmem>>, vector<32x128xf32>
    %cst = arith.constant dense<0.000000e+00> : vector<16x128xf32>
    %5 = tpu.matmul %3, %4, %cst {dimension_numbers = #tpu.dot_dimension_numbers<[1], [0], [0], [1], [0, 0, 1, 1], [], []>} : vector<16x32xf32>, vector<32x128xf32>, vector<16x128xf32> -> vector<16x128xf32>
    %c0_4 = arith.constant 0 : index
    %c0_5 = arith.constant 0 : index
    %6 = vector.load %arg4[%c0_4, %c0_5] : memref<1x128xf32, #tpu.memory_space<vmem>>, vector<1x128xf32>
    %7 = vector.broadcast %6 : vector<1x128xf32> to vector<16x128xf32>
    %8 = arith.addf %5, %7 : vector<16x128xf32>
    %cst_6 = arith.constant 5.000000e-01 : f32
    %9 = vector.broadcast %cst_6 : f32 to vector<16x128xf32>
    %10 = arith.mulf %9, %8 : vector<16x128xf32>
    %cst_7 = arith.constant 0.707106769 : f32
    %11 = vector.broadcast %cst_7 : f32 to vector<16x128xf32>
    %12 = arith.mulf %8, %11 : vector<16x128xf32>
    %13 = math.erf %12 : vector<16x128xf32>
    %cst_8 = arith.constant 1.000000e+00 : f32
    %14 = vector.broadcast %cst_8 : f32 to vector<16x128xf32>
    %15 = arith.addf %14, %13 : vector<16x128xf32>
    %16 = arith.mulf %10, %15 : vector<16x128xf32>
    %c0_9 = arith.constant 0 : index
    %c0_10 = arith.constant 0 : index
    %17 = vector.load %arg7[%c0_9, %c0_10] : memref<16x32xf32, #tpu.memory_space<vmem>>, vector<16x32xf32>
    %c0_11 = arith.constant 0 : index
    %c0_12 = arith.constant 0 : index
    %18 = vector.load %arg5[%c0_11, %c0_12] : memref<128x32xf32, #tpu.memory_space<vmem>>, vector<128x32xf32>
    %cst_13 = arith.constant dense<0.000000e+00> : vector<16x32xf32>
    %19 = tpu.matmul %16, %18, %cst_13 {dimension_numbers = #tpu.dot_dimension_numbers<[1], [0], [0], [1], [0, 0, 1, 1], [], []>} : vector<16x128xf32>, vector<128x32xf32>, vector<16x32xf32> -> vector<16x32xf32>
    %20 = arith.addf %17, %19 : vector<16x32xf32>
    %c0_14 = arith.constant 0 : index
    %c0_15 = arith.constant 0 : index
    %21 = vector.load %arg7[%c0_14, %c0_15] : memref<16x32xf32, #tpu.memory_space<vmem>>, vector<16x32xf32>
    tpu.vector_store %arg7[%c0_14, %c0_15], %20 {strides = array<i32>} : memref<16x32xf32, #tpu.memory_space<vmem>>, vector<16x32xf32>,
    return
  }
  func.func @transform_0(%arg0: i32, %arg1: i32) -> (i32, i32) {
    %c0_i32 = arith.constant 0 : i32
    %c0_i32_0 = arith.constant 0 : i32
    return %arg0, %c0_i32 : i32, i32
  }
  func.func @transform_1(%arg0: i32, %arg1: i32) -> (i32, i32) {
    %c0_i32 = arith.constant 0 : i32
    %c0_i32_0 = arith.constant 0 : i32
    return %c0_i32, %arg1 : i32, i32
  }
  func.func @transform_2(%arg0: i32, %arg1: i32) -> (i32, i32) {
    %c0_i32 = arith.constant 0 : i32
    %c0_i32_0 = arith.constant 0 : i32
    return %c0_i32, %arg1 : i32, i32
  }
  func.func @transform_3(%arg0: i32, %arg1: i32) -> (i32, i32) {
    %c0_i32 = arith.constant 0 : i32
    %c0_i32_0 = arith.constant 0 : i32
    return %arg1, %c0_i32 : i32, i32
  }
  func.func @transform_4(%arg0: i32, %arg1: i32) -> (i32, i32) {
    %c0_i32 = arith.constant 0 : i32
    %c0_i32_0 = arith.constant 0 : i32
    %c0_i32_1 = arith.constant 0 : i32
    return %c0_i32, %c0_i32_0 : i32, i32
  }
  func.func @transform_5(%arg0: i32, %arg1: i32) -> (i32, i32) {
    %c0_i32 = arith.constant 0 : i32
    %c0_i32_0 = arith.constant 0 : i32
    return %arg0, %c0_i32 : i32, i32
  }
}

</mosaic_0001>

<llo_original>
// kernel: _mlp_forward.1
$region0: #{_mlp_forward.1}
  #allocation0 [shape = 'u32[]', space=smem, size = 0x4, offset = 0x4, fixed_abs, tag = 'smem constant byte address 0x4 - core index']
  #allocation1 [shape = 'u32[72,128]{1,0:T(1,128)}', space=vmem, size = 0x9000, scoped, tag = 'internal scratch']
  %s0 = inlined_call_operand.vmem [shape: f32[16,32], index: 0, kind: input, shape index: {}]
  %s1 = inlined_call_operand.vmem [shape: f32[32,128], index: 1, kind: input, shape index: {}]
  %s2 = inlined_call_operand.vmem [shape: f32[1,128], index: 2, kind: input, shape index: {}]
  %s3 = inlined_call_operand.vmem [shape: f32[128,32], index: 3, kind: input, shape index: {}]
  %s4 = inlined_call_operand.vmem [shape: f32[1,32], index: 4, kind: input, shape index: {}]
  %s5 = inlined_call_operand.hbm [shape: f32[16,32], index: 5, kind: output, shape index: {}]
  %s6 = sld [smem:[#allocation0]]
  $region34: #{_mlp_forward.1} parent=0
    _
  %s8 = ssub.s32 1, %s6
  %s9 = scalar_select 0, %s8, %s6
  $region1: #{_mlp_forward.1} parent=0
    #allocation2 [shape = 'u8[8192]{0}', space=vmem, size = 0x2000, scoped, tag = 'output window, operand 0, single buffered']
    #allocation3 [shape = 's32[1]{0}', space=sflag, size = 0x4, scoped, tag = 'scoped memory for _mlp_forward.1']
    %10 = vsyncpa [#allocation3], 0
    // Predicated region
    $region2: #{_mlp_forward.1} parent=1 // pred_check
      _
    $region3: #{_mlp_forward.1} parent=1 // pred_check_branch
      %12 = sbr.rel (0) target = $region5
    $region4: #{_mlp_forward.1} parent=1 // pred_region
      _
    $region5: #{_mlp_forward.1} parent=1 // pred_fallthru
      _
    // Predicated region
    $region6: #{_mlp_forward.1} parent=1 // pred_check
      _
    $region7: #{_mlp_forward.1} parent=1 // pred_check_branch
      %14 = sbr.rel (0) target = $region9
    $region8: #{_mlp_forward.1} parent=1 // pred_region
      _
    $region9: #{_mlp_forward.1} parent=1 // pred_fallthru
      _
    // Predicated region
    $region10: #{_mlp_forward.1} parent=1 // pred_check
      _
    $region11: #{_mlp_forward.1} parent=1 // pred_check_branch
      %16 = sbr.rel (0) target = $region13
    $region12: #{_mlp_forward.1} parent=1 // pred_region
      _
    $region13: #{_mlp_forward.1} parent=1 // pred_fallthru
      _
    // Predicated region
    $region14: #{_mlp_forward.1} parent=1 // pred_check
      _
    $region15: #{_mlp_forward.1} parent=1 // pred_check_branch
      %18 = sbr.rel (0) target = $region17
    $region16: #{_mlp_forward.1} parent=1 // pred_region
      _
    $region17: #{_mlp_forward.1} parent=1 // pred_fallthru
      _
    // Predicated region
    $region18: #{_mlp_forward.1} parent=1 // pred_check
      _
    $region19: #{_mlp_forward.1} parent=1 // pred_check_branch
      %20 = sbr.rel (0) target = $region21
    $region20: #{_mlp_forward.1} parent=1 // pred_region
      _
    $region21: #{_mlp_forward.1} parent=1 // pred_fallthru
      _
    %p21 = scmp.eq.s32.totalorder 0, 0
    // Predicated region
    $region22: #{_mlp_forward.1} parent=1 // pred_check
      %p22 = pneg %p21
    $region23: #{_mlp_forward.1} parent=1 // pred_check_branch
      %24 = sbr.rel (%p22) target = $region25
    $region24: #{_mlp_forward.1} parent=1 // pred_region
      %v25 = vld [vmem:[%s4] sm:$0x1]
      %v27 = vperm.slane %v25, 0
      %vm29 = vcmask 261120
      %30 = vst.msk [vmem:[#allocation2] sm:$0xff] %vm29, %v27
      %31 = vst.msk [vmem:[#allocation2 + $0x8] sm:$0xff] %vm29, %v27
    $region25: #{_mlp_forward.1} parent=1 // pred_fallthru
      _
    %v32 = vld [vmem:[%s0] sm:$0xff]
    %v33 = vld [vmem:[%s0 + $0x8] sm:$0xff]
    %v34 = vld [vmem:[%s1] sm:$0xff]
    %v35 = vld [vmem:[%s1 + $0x8] sm:$0xff]
    %v36 = vld [vmem:[%s1 + $0x10] sm:$0xff]
    %v37 = vld [vmem:[%s1 + $0x18] sm:$0xff]
    %v38 = vld [vmem:[%s2] sm:$0x1]
    %v40 = vperm.slane %v38, 0
    %vm42 = vcmask 261120
    %v44 = vsel %vm42, %v32, 0
    %v47 = vsel %vm42, %v33, 0
    %49 = vmatpush.msra.mxu0 0.0
    %50 = vmatpush.msra.mxu0 0.0
    %51 = vmatpush.msra.mxu0 0.0
    %52 = vmatpush.msra.mxu0 0.0
    %53 = vmatpush.msra.mxu0 0.0
    %54 = vmatpush.msra.mxu0 0.0
    %55 = vmatpush.msra.mxu0 0.0
    %56 = vmatpush.msra.mxu0 0.0
    %57 = vmatpush.msra.mxu0 0.0
    %58 = vmatpush.msra.mxu0 0.0
    %59 = vmatpush.msra.mxu0 0.0
    %60 = vmatpush.msra.mxu0 0.0
    %61 = vmatpush.msra.mxu0 %v37
    %62 = vmatpush.msra.mxu0 %v36
    %63 = vmatpush.msra.mxu0 %v35
    %64 = vmatpush.msra.mxu0 %v34
    %65 = vmatmul.f32.gmra.mxu0 %v44
    %v66 = vpop.f32.mrf.mxu0
    %v67 = vadd.f32 %v40, %v66
    %68 = vmatmul.f32.gmra.mxu0 %v47
    %v69 = vpop.f32.mrf.mxu0
    %v70 = vadd.f32 %v40, %v69
    %71 = vdwg.mxu0
    %v72 = vmul.f32 %v67, 0.5
    %v73 = vmul.f32 %v70, 0.5
    %v74 = vmul.f32 %v67, 0.70710677
    %v75 = vmul.f32 %v70, 0.70710677
    %v76 = vmul.f32 %v74, %v74
    %v77 = vmin.f32 16.0, %v76
    %v78 = vmul.f32 %v77, 2.1237322e-06
    %v79 = vadd.f32 %v78, 0.00028619796
    %v80 = vmul.f32 %v77, %v79
    %v81 = vadd.f32 %v80, 0.0036580483
    %v82 = vmul.f32 %v77, %v81
    %v83 = vadd.f32 %v82, 0.05243302
    %v84 = vmul.f32 %v77, %v83
    %v85 = vadd.f32 %v84, 0.18741608
    %v86 = vmul.f32 %v77, %v85
    %v87 = vadd.f32 %v86, 1.1283791
    %v88 = vmul.f32 %v74, %v87
    %v89 = vmul.f32 %v77, 3.8918573e-05
    %v90 = vadd.f32 %v89, 0.001143296
    %v91 = vmul.f32 %v77, %v90
    %v92 = vadd.f32 %v91, 0.014752088
    %v93 = vmul.f32 %v77, %v92
    %v94 = vadd.f32 %v93, 0.112945676
    %v95 = vmul.f32 %v77, %v94
    %v96 = vadd.f32 %v95, 0.4994258
    %v97 = vmul.f32 %v77, %v96
    %v98 = vadd.f32 %v97, 1.0
    %v99 = vrcp.pop %v98
    %v100 = vmul.f32 %v98, %v99
    %v101 = vsub.f32 1.0, %v100
    %v102 = vmul.f32 %v99, %v101
    %v103 = vadd.f32 %v99, %v102
    %vm104 = vweird.f32 %v98
    %vm105 = vweird.f32 %v99
    %vm106 = vmor %vm104, %vm105
    %v107 = vsel %vm106, %v99, %v103
    %v108 = vand.u32 2147483647, %v98
    %vm109 = vcmp.eq.f32.partialorder %v108, 8.507059e+37
    %v110 = vand.u32 %v98, 2147483648
    %v111 = vor.u32 1.1754944e-38, %v110
    %v112 = vsel %vm109, %v111, %v107
    %v113 = vmul.f32 %v88, %v112
    %v114 = vmin.f32 %v113, 1.0
    %v115 = vmax.f32 %v114, -1.0
    %v116 = vmul.f32 %v75, %v75
    %v117 = vmin.f32 16.0, %v116
    %v118 = vmul.f32 %v117, 2.1237322e-06
    %v119 = vadd.f32 %v118, 0.00028619796
    %v120 = vmul.f32 %v117, %v119
    %v121 = vadd.f32 %v120, 0.0036580483
    %v122 = vmul.f32 %v117, %v121
    %v123 = vadd.f32 %v122, 0.05243302
    %v124 = vmul.f32 %v117, %v123
    %v125 = vadd.f32 %v124, 0.18741608
    %v126 = vmul.f32 %v117, %v125
    %v127 = vadd.f32 %v126, 1.1283791
    %v128 = vmul.f32 %v75, %v127
    %v129 = vmul.f32 %v117, 3.8918573e-05
    %v130 = vadd.f32 %v129, 0.001143296
    %v131 = vmul.f32 %v117, %v130
    %v132 = vadd.f32 %v131, 0.014752088
    %v133 = vmul.f32 %v117, %v132
    %v134 = vadd.f32 %v133, 0.112945676
    %v135 = vmul.f32 %v117, %v134
    %v136 = vadd.f32 %v135, 0.4994258
    %v137 = vmul.f32 %v117, %v136
    %v138 = vadd.f32 %v137, 1.0
    %v139 = vrcp.pop %v138
    %v140 = vmul.f32 %v138, %v139
    %v141 = vsub.f32 1.0, %v140
    %v142 = vmul.f32 %v139, %v141
    %v143 = vadd.f32 %v139, %v142
    %vm144 = vweird.f32 %v138
    %vm145 = vweird.f32 %v139
    %vm146 = vmor %vm144, %vm145
    %v147 = vsel %vm146, %v139, %v143
    %v148 = vand.u32 2147483647, %v138
    %vm149 = vcmp.eq.f32.partialorder %v148, 8.507059e+37
    %v150 = vand.u32 %v138, 2147483648
    %v151 = vor.u32 1.1754944e-38, %v150
    %v152 = vsel %vm149, %v151, %v147
    %v153 = vmul.f32 %v128, %v152
    %v154 = vmin.f32 %v153, 1.0
    %v155 = vmax.f32 %v154, -1.0
    %v156 = vadd.f32 %v115, 1.0
    %v157 = vadd.f32 %v155, 1.0
    %v158 = vmul.f32 %v72, %v156
    %v159 = vmul.f32 %v73, %v157
    %v160 = vld [vmem:[#allocation2] sm:$0xff]
    %v161 = vld [vmem:[#allocation2 + $0x8] sm:$0xff]
    %v162 = vld [vmem:[%s3] sm:$0xff]
    %v163 = vld [vmem:[%s3 + $0x8] sm:$0xff]
    %v164 = vld [vmem:[%s3 + $0x10] sm:$0xff]
    %v165 = vld [vmem:[%s3 + $0x18] sm:$0xff]
    %v166 = vld [vmem:[%s3 + $0x20] sm:$0xff]
    %v167 = vld [vmem:[%s3 + $0x28] sm:$0xff]
    %v168 = vld [vmem:[%s3 + $0x30] sm:$0xff]
    %v169 = vld [vmem:[%s3 + $0x38] sm:$0xff]
    %v170 = vld [vmem:[%s3 + $0x40] sm:$0xff]
    %v171 = vld [vmem:[%s3 + $0x48] sm:$0xff]
    %v172 = vld [vmem:[%s3 + $0x50] sm:$0xff]
    %v173 = vld [vmem:[%s3 + $0x58] sm:$0xff]
    %v174 = vld [vmem:[%s3 + $0x60] sm:$0xff]
    %v175 = vld [vmem:[%s3 + $0x68] sm:$0xff]
    %v176 = vld [vmem:[%s3 + $0x70] sm:$0xff]
    %v177 = vld [vmem:[%s3 + $0x78] sm:$0xff]
    %178 = vmatpush.msra.mxu0 %v177
    %179 = vmatpush.msra.mxu0 %v176
    %180 = vmatpush.msra.mxu0 %v175
    %181 = vmatpush.msra.mxu0 %v174
    %182 = vmatpush.msra.mxu0 %v173
    %183 = vmatpush.msra.mxu0 %v172
    %184 = vmatpush.msra.mxu0 %v171
    %185 = vmatpush.msra.mxu0 %v170
    %186 = vmatpush.msra.mxu0 %v169
    %187 = vmatpush.msra.mxu0 %v168
    %188 = vmatpush.msra.mxu0 %v167
    %189 = vmatpush.msra.mxu0 %v166
    %190 = vmatpush.msra.mxu0 %v165
    %191 = vmatpush.msra.mxu0 %v164
    %192 = vmatpush.msra.mxu0 %v163
    %193 = vmatpush.msra.mxu0 %v162
    %194 = vmatmul.f32.gmra.mxu0 %v158
    %v195 = vpop.f32.mrf.mxu0
    %v196 = vadd.f32 0.0, %v195
    %197 = vmatmul.f32.gmra.mxu0 %v159
    %v198 = vpop.f32.mrf.mxu0
    %v199 = vadd.f32 0.0, %v198
    %200 = vdwg.mxu0
    %v201 = vadd.f32 %v160, %v196
    %v202 = vadd.f32 %v161, %v199
    %203 = vst.msk [vmem:[#allocation2] sm:$0xff] %vm42, %v201
    %204 = vst.msk [vmem:[#allocation2 + $0x8] sm:$0xff] %vm42, %v202
    // Predicated region
    $region26: #{_mlp_forward.1} parent=1 // pred_check
      _
    $region27: #{_mlp_forward.1} parent=1 // pred_check_branch
      %206 = sbr.rel (0) target = $region29
    $region28: #{_mlp_forward.1} parent=1 // pred_region
      %208 = vsyncadd [#allocation3], 0
      %s209 = sshll.u32 [#allocation2], 4
      %s210 = int_to_ptr.vmem [resolvable:$true] %s209
      %s211 = sshll.u32 %s5, 4
      %s212 = int_to_ptr.hbm [resolvable:$true] %s211
      %217 = dma.vmem_to_hbm [thread:$0]  %s210, 256, %s212, [#allocation3], 128, 128, 8
    $region29: #{_mlp_forward.1} parent=1 // pred_fallthru
      _
    // Predicated region
    $region30: #{_mlp_forward.1} parent=1 // pred_check
      _
    $region31: #{_mlp_forward.1} parent=1 // pred_check_branch
      %219 = sbr.rel (0) target = $region33
    $region32: #{_mlp_forward.1} parent=1 // pred_region
      %221 = dma.done [#allocation3], 256
    $region33: #{_mlp_forward.1} parent=1 // pred_fallthru
      _
    %222 = vsyncpa [#allocation3], 1

</llo_original>
